<compile_context>
chip_gen: v6e
topology: v6e:2x2x1
jax: 0.10.0
libtpu: 0.0.40
codegen_flags: <defaults>
</compile_context>

<pallas_src>
import functools
import math

import jax
import jax.numpy as jnp
from jax.experimental import pallas as pl
from jax.experimental.pallas import tpu as pltpu

MEAN = 0.0
STD = 0.1

_LANES = 512          # lane-dense rows: 4 full vregs wide, unmasked stores
_MAX_TILE_ROWS = 512  # (512, 512) f32 block = 1 MiB -> fits v5e/v6e/v7x VMEM budgets


def _round_up(x, m):
    return (x + m - 1) // m * m


def _hash_u32(x):
    """lowbias32 integer hash: uint32 -> well-mixed uint32 (portable VPU ops)."""
    x = x ^ (x >> jnp.uint32(16))
    x = x * jnp.uint32(0x7FEB352D)
    x = x ^ (x >> jnp.uint32(15))
    x = x * jnp.uint32(0x846CA68B)
    x = x ^ (x >> jnp.uint32(16))
    return x


def _bits_to_uniform(bits):
    """uint32 random bits -> float32 uniform in [0, 1) via the mantissa trick."""
    mant = bits >> jnp.uint32(9)  # keep 23 mantissa bits
    one_to_two = jax.lax.bitcast_convert_type(
        mant | jnp.uint32(0x3F800000), jnp.float32)  # [1, 2)
    return one_to_two - 1.0


def gaussian_noise_kernel(seed_ref, x_ref, o_ref, *, mean, std):
    i = pl.program_id(0)
    tr, c = x_ref.shape
    half = tr // 2

    # Globally unique per-element counter (includes grid position), mixed with
    # the user seed -> independent noise per tile, no per-tile reseed banding.
    row = jax.lax.broadcasted_iota(jnp.int32, (tr, c), 0)
    col = jax.lax.broadcasted_iota(jnp.int32, (tr, c), 1)
    idx = (i * tr + row) * c + col
    seed = seed_ref[0].astype(jnp.uint32) * jnp.uint32(0x9E3779B9)
    bits = _hash_u32(idx.astype(jnp.uint32) + seed)

    u = _bits_to_uniform(bits)
    u1 = 1.0 - u[:half, :]   # (0, 1]: log() is safe
    u2 = u[half:, :]         # [0, 1)

    # Box-Muller, both outputs: one log/sqrt pair produces two normal halves.
    r = jnp.sqrt(-2.0 * jnp.log(u1))
    theta = jnp.float32(2.0 * math.pi) * u2
    z = jnp.concatenate([r * jnp.cos(theta), r * jnp.sin(theta)], axis=0)

    noise = jnp.float32(mean) + jnp.float32(std) * z
    o_ref[...] = (x_ref[...].astype(jnp.float32) + noise).astype(o_ref.dtype)


def gaussian_noise(x, seed=0, mean=MEAN, std=STD):
    """x: any-shape float tensor. Returns x + N(mean, std), same shape/dtype."""
    orig_shape = x.shape
    dtype = x.dtype
    n = x.size

    # Lane-dense 2-D slab, padded up to a whole number of (tile_rows, _LANES) tiles.
    rows = pl.cdiv(n, _LANES)
    tile_rows = min(_MAX_TILE_ROWS, _round_up(max(rows, 1), 16))
    rows_p = _round_up(rows, tile_rows)
    padded = rows_p * _LANES

    flat = x.reshape(-1)
    if padded != n:
        flat = jnp.concatenate([flat, jnp.zeros((padded - n,), dtype)])
    x2d = flat.reshape(rows_p, _LANES)

    seed_arr = jnp.asarray([seed], dtype=jnp.int32)
    grid = (rows_p // tile_rows,)

    kernel = functools.partial(gaussian_noise_kernel, mean=mean, std=std)

    cost = pl.CostEstimate(
        flops=20 * padded,                             # hash + Box-Muller VPU work
        transcendentals=2 * padded,                    # log/sqrt/cos/sin per pair
        bytes_accessed=2 * padded * dtype.itemsize,    # read x + write out
    )

    out2d = pl.pallas_call(
        kernel,
        out_shape=jax.ShapeDtypeStruct((rows_p, _LANES), dtype),
        grid=grid,
        in_specs=[
            pl.BlockSpec(memory_space=pltpu.MemorySpace.SMEM),    # seed scalar
            pl.BlockSpec((tile_rows, _LANES), lambda i: (i, 0)),  # x tile
        ],
        out_specs=pl.BlockSpec((tile_rows, _LANES), lambda i: (i, 0)),
        input_output_aliases={1: 0},
        compiler_params=pltpu.CompilerParams(
            dimension_semantics=("parallel",),
        ),
        cost_estimate=cost,
    )(seed_arr, x2d)

    return out2d.reshape(-1)[:n].reshape(orig_shape)


if __name__ == "__main__":
    key = jax.random.PRNGKey(0)
    x = jax.random.normal(key, (2, 4, 16, 16), dtype=jnp.float32)  # NCHW

    y = gaussian_noise(x, seed=0)
    jax.block_until_ready(y)

    # Sanity checks: shape/dtype preserved, output differs by small N(0, 0.1) noise.
    assert y.shape == x.shape and y.dtype == x.dtype
    diff = y - x
    assert bool(jnp.all(jnp.isfinite(diff)))
    assert float(jnp.max(jnp.abs(diff))) < 1.0
    assert abs(float(jnp.mean(diff))) < 0.05
    s = float(jnp.std(diff))
    assert 0.05 < s < 0.2

    print("KERNEL_OK")
</pallas_src>

<mosaic_0001>
module attributes {stable_mosaic.version = 11 : i64} {
  func.func @gaussian_noise_kernel(%arg0: i32, %arg1: memref<1xi32, #tpu.memory_space<smem>>, %arg2: memref<16x512xf32, #tpu.memory_space<vmem>>, %arg3: memref<16x512xf32, #tpu.memory_space<vmem>>) attributes {dimension_semantics = [#tpu.dimension_semantics<parallel>], iteration_bounds = array<i64: 1>, scalar_prefetch = 0 : i64, scratch_operands = 0 : i64, tpu.core_type = #tpu.core_type<tc>, window_params = [{transform_indices = @transform_0, window_bounds = array<i64: 1>}, {transform_indices = @transform_1, window_bounds = array<i64: 16, 512>}, {transform_indices = @transform_2, window_bounds = array<i64: 16, 512>}]} {
    %0 = tpu.iota {dimensions = array<i32: 0>} : vector<16x512xi32>
    %1 = tpu.iota {dimensions = array<i32: 1>} : vector<16x512xi32>
    %c16_i32 = arith.constant 16 : i32
    %2 = arith.muli %arg0, %c16_i32 : i32
    %3 = vector.broadcast %2 : i32 to vector<16x512xi32>
    %4 = arith.addi %3, %0 : vector<16x512xi32>
    %c512_i32 = arith.constant 512 : i32
    %5 = vector.broadcast %c512_i32 : i32 to vector<16x512xi32>
    %6 = arith.muli %4, %5 : vector<16x512xi32>
    %7 = arith.addi %6, %1 : vector<16x512xi32>
    %c0 = arith.constant 0 : index
    %8 = memref.load %arg1[%c0] : memref<1xi32, #tpu.memory_space<smem>>
    %c-1640531527_i32 = arith.constant -1640531527 : i32
    %9 = arith.muli %8, %c-1640531527_i32 : i32
    %10 = vector.broadcast %9 : i32 to vector<16x512xi32>
    %11 = arith.addi %7, %10 : vector<16x512xi32>
    %c16_i32_0 = arith.constant 16 : i32
    %12 = vector.broadcast %c16_i32_0 : i32 to vector<16x512xi32>
    %13 = arith.shrui %11, %12 : vector<16x512xi32>
    %14 = arith.xori %11, %13 : vector<16x512xi32>
    %c2146121005_i32 = arith.constant 2146121005 : i32
    %15 = vector.broadcast %c2146121005_i32 : i32 to vector<16x512xi32>
    %16 = arith.muli %14, %15 : vector<16x512xi32>
    %c15_i32 = arith.constant 15 : i32
    %17 = vector.broadcast %c15_i32 : i32 to vector<16x512xi32>
    %18 = arith.shrui %16, %17 : vector<16x512xi32>
    %19 = arith.xori %16, %18 : vector<16x512xi32>
    %c-2073254261_i32 = arith.constant -2073254261 : i32
    %20 = vector.broadcast %c-2073254261_i32 : i32 to vector<16x512xi32>
    %21 = arith.muli %19, %20 : vector<16x512xi32>
    %c16_i32_1 = arith.constant 16 : i32
    %22 = vector.broadcast %c16_i32_1 : i32 to vector<16x512xi32>
    %23 = arith.shrui %21, %22 : vector<16x512xi32>
    %24 = arith.xori %21, %23 : vector<16x512xi32>
    %c9_i32 = arith.constant 9 : i32
    %25 = vector.broadcast %c9_i32 : i32 to vector<16x512xi32>
    %26 = arith.shrui %24, %25 : vector<16x512xi32>
    %c1065353216_i32 = arith.constant 1065353216 : i32
    %27 = vector.broadcast %c1065353216_i32 : i32 to vector<16x512xi32>
    %28 = arith.ori %26, %27 : vector<16x512xi32>
    %29 = tpu.bitcast %28 : vector<16x512xi32> -> vector<16x512xf32>
    %cst = arith.constant 1.000000e+00 : f32
    %30 = vector.broadcast %cst : f32 to vector<16x512xf32>
    %31 = arith.subf %29, %30 : vector<16x512xf32>
    %32 = vector.extract_strided_slice %31 {offsets = [0, 0], sizes = [8, 512], strides = [1, 1]} : vector<16x512xf32> to vector<8x512xf32>
    %cst_2 = arith.constant 1.000000e+00 : f32
    %33 = vector.broadcast %cst_2 : f32 to vector<8x512xf32>
    %34 = arith.subf %33, %32 : vector<8x512xf32>
    %35 = vector.extract_strided_slice %31 {offsets = [8, 0], sizes = [8, 512], strides = [1, 1]} : vector<16x512xf32> to vector<8x512xf32>
    %36 = math.log %34 : vector<8x512xf32>
    %cst_3 = arith.constant -2.000000e+00 : f32
    %37 = vector.broadcast %cst_3 : f32 to vector<8x512xf32>
    %38 = arith.mulf %37, %36 : vector<8x512xf32>
    %39 = math.sqrt %38 : vector<8x512xf32>
    %cst_4 = arith.constant 6.28318548 : f32
    %40 = vector.broadcast %cst_4 : f32 to vector<8x512xf32>
    %41 = arith.mulf %40, %35 : vector<8x512xf32>
    %42 = math.cos %41 : vector<8x512xf32>
    %43 = arith.mulf %39, %42 : vector<8x512xf32>
    %44 = math.sin %41 : vector<8x512xf32>
    %45 = arith.mulf %39, %44 : vector<8x512xf32>
    %46 = tpu.concatenate %43, %45 in 0 : vector<8x512xf32>, vector<8x512xf32> -> vector<16x512xf32>
    %cst_5 = arith.constant 1.000000e-01 : f32
    %47 = vector.broadcast %cst_5 : f32 to vector<16x512xf32>
    %48 = arith.mulf %47, %46 : vector<16x512xf32>
    %cst_6 = arith.constant 0.000000e+00 : f32
    %49 = vector.broadcast %cst_6 : f32 to vector<16x512xf32>
    %50 = arith.addf %49, %48 : vector<16x512xf32>
    %c0_7 = arith.constant 0 : index
    %c0_8 = arith.constant 0 : index
    %51 = vector.load %arg2[%c0_7, %c0_8] : memref<16x512xf32, #tpu.memory_space<vmem>>, vector<16x512xf32>
    %52 = arith.addf %51, %50 : vector<16x512xf32>
    %c0_9 = arith.constant 0 : index
    %c0_10 = arith.constant 0 : index
    %53 = vector.load %arg3[%c0_9, %c0_10] : memref<16x512xf32, #tpu.memory_space<vmem>>, vector<16x512xf32>
    tpu.vector_store %arg3[%c0_9, %c0_10], %52 {strides = array<i32>} : memref<16x512xf32, #tpu.memory_space<vmem>>, vector<16x512xf32>,
    return
  }
  func.func @transform_0(%arg0: i32) -> i32 {
    %c0_i32 = arith.constant 0 : i32
    %c0_i32_0 = arith.constant 0 : i32
    return %c0_i32 : i32
  }
  func.func @transform_1(%arg0: i32) -> (i32, i32) {
    %c0_i32 = arith.constant 0 : i32
    %c0_i32_0 = arith.constant 0 : i32
    return %arg0, %c0_i32 : i32, i32
  }
  func.func @transform_2(%arg0: i32) -> (i32, i32) {
    %c0_i32 = arith.constant 0 : i32
    %c0_i32_0 = arith.constant 0 : i32
    return %arg0, %c0_i32 : i32, i32
  }
}

</mosaic_0001>

<llo_original>
// kernel: tpu_custom_call.1
$region0: #{tpu_custom_call.1}
  #allocation0 [shape = 'u32[]', space=smem, size = 0x4, offset = 0x4, fixed_abs, tag = 'smem constant byte address 0x4 - core index']
  #allocation1 [shape = 'u32[144,128]{1,0:T(1,128)}', space=vmem, size = 0x12000, scoped, tag = 'internal scratch']
  #allocation2 [shape = 's32[1]{0:T(128)S(6)}', space=smem, size = 0x200, scoped, tag = 'scoped memory for tpu_custom_call.1']
  %s0 = inlined_call_operand.<no memory space> [shape: s32[1], index: 0, kind: input, shape index: {}]
  %s1 = inlined_call_operand.hbm [shape: f32[16,512], index: 1, kind: input, shape index: {}, may-alias: {1,2}]
  %s2 = inlined_call_operand.hbm [shape: f32[16,512], index: 2, kind: output, shape index: {}, may-alias: {1,2}]
  %s3 = sld [smem:[#allocation0]]
  $region22: #{tpu_custom_call.1} parent=0
    _
  %s5 = ssub.s32 1, %s3
  %s6 = scalar_select 0, %s5, %s3
  %7 = sst [smem:[#allocation2]] %s0
  $region1: #{tpu_custom_call.1} parent=0
    #allocation3 [shape = 'u8[32768]{0}', space=vmem, size = 0x8000, scoped, tag = 'input window, operand 1, single buffered']
    #allocation4 [shape = 's32[1]{0}', space=sflag, size = 0x4, scoped, tag = 'scoped memory for tpu_custom_call.1']
    #allocation5 [shape = 's32[1]{0}', space=sflag, size = 0x4, scoped, tag = 'scoped memory for tpu_custom_call.1']
    #allocation6 [shape = 'u8[32768]{0}', space=vmem, size = 0x8000, scoped, tag = 'output window, operand 0, single buffered']
    %8 = vsyncpa [#allocation4], 0
    %9 = vsyncpa [#allocation5], 0
    // Predicated region
    $region2: #{tpu_custom_call.1} parent=1 // pred_check
      _
    $region3: #{tpu_custom_call.1} parent=1 // pred_check_branch
      %11 = sbr.rel (0) target = $region5
    $region4: #{tpu_custom_call.1} parent=1 // pred_region
      _
    $region5: #{tpu_custom_call.1} parent=1 // pred_fallthru
      _
    // Predicated region
    $region6: #{tpu_custom_call.1} parent=1 // pred_check
      _
    $region7: #{tpu_custom_call.1} parent=1 // pred_check_branch
      %13 = sbr.rel (0) target = $region9
    $region8: #{tpu_custom_call.1} parent=1 // pred_region
      %s15 = ssub.s32 1024, 1024
      %16 = vsyncadd [#allocation4], %s15
      %s17 = sshll.u32 [#allocation3], 4
      %s18 = int_to_ptr.vmem [resolvable:$true] %s17
      %23 = dma.hbm_to_vmem [thread:$0]  %s1, 1024, %s18, [#allocation4], 512, 512, 32
    $region9: #{tpu_custom_call.1} parent=1 // pred_fallthru
      _
    // Predicated region
    $region10: #{tpu_custom_call.1} parent=1 // pred_check
      _
    $region11: #{tpu_custom_call.1} parent=1 // pred_check_branch
      %25 = sbr.rel (0) target = $region13
    $region12: #{tpu_custom_call.1} parent=1 // pred_region
      %26 = dma.done [#allocation4], 1024
    $region13: #{tpu_custom_call.1} parent=1 // pred_fallthru
      _
    %v27 = vlaneseq
    %v28 = vshrl.u32 %v27, 7
    %v29 = vadd.s32 %v28, 8
    %v30 = vlaneseq
    %v31 = vand.u32 %v30, 127
    %v32 = vadd.s32 %v31, 128
    %v33 = vadd.s32 %v31, 256
    %v34 = vadd.s32 %v31, 384
    %s35 = smul.u32 0, 16
    %v36 = vstv %s35
    %v37 = vadd.s32 %v36, %v28
    %v38 = vadd.s32 %v36, %v29
    %v39 = vmul.u32 %v37, 512
    %v40 = vmul.u32 %v38, 512
    %v41 = vadd.s32 %v39, %v31
    %v42 = vadd.s32 %v39, %v32
    %v43 = vadd.s32 %v39, %v33
    %v44 = vadd.s32 %v39, %v34
    %v45 = vadd.s32 %v40, %v31
    %v46 = vadd.s32 %v40, %v32
    %v47 = vadd.s32 %v40, %v33
    %v48 = vadd.s32 %v40, %v34
    %s49 = sld [smem:[#allocation2]]
    %s50 = smul.u32 %s49, 2654435769
    %v51 = vstv %s50
    %v52 = vadd.s32 %v41, %v51
    %v53 = vadd.s32 %v42, %v51
    %v54 = vadd.s32 %v43, %v51
    %v55 = vadd.s32 %v44, %v51
    %v56 = vadd.s32 %v45, %v51
    %v57 = vadd.s32 %v46, %v51
    %v58 = vadd.s32 %v47, %v51
    %v59 = vadd.s32 %v48, %v51
    %v60 = vshrl.u32 %v52, 16
    %v61 = vshrl.u32 %v53, 16
    %v62 = vshrl.u32 %v54, 16
    %v63 = vshrl.u32 %v55, 16
    %v64 = vshrl.u32 %v56, 16
    %v65 = vshrl.u32 %v57, 16
    %v66 = vshrl.u32 %v58, 16
    %v67 = vshrl.u32 %v59, 16
    %v68 = vxor.u32 %v52, %v60
    %v69 = vxor.u32 %v53, %v61
    %v70 = vxor.u32 %v54, %v62
    %v71 = vxor.u32 %v55, %v63
    %v72 = vxor.u32 %v56, %v64
    %v73 = vxor.u32 %v57, %v65
    %v74 = vxor.u32 %v58, %v66
    %v75 = vxor.u32 %v59, %v67
    %v76 = vmul.u32 %v68, 2146121005
    %v77 = vmul.u32 %v69, 2146121005
    %v78 = vmul.u32 %v70, 2146121005
    %v79 = vmul.u32 %v71, 2146121005
    %v80 = vmul.u32 %v72, 2146121005
    %v81 = vmul.u32 %v73, 2146121005
    %v82 = vmul.u32 %v74, 2146121005
    %v83 = vmul.u32 %v75, 2146121005
    %v84 = vshrl.u32 %v76, 15
    %v85 = vshrl.u32 %v77, 15
    %v86 = vshrl.u32 %v78, 15
    %v87 = vshrl.u32 %v79, 15
    %v88 = vshrl.u32 %v80, 15
    %v89 = vshrl.u32 %v81, 15
    %v90 = vshrl.u32 %v82, 15
    %v91 = vshrl.u32 %v83, 15
    %v92 = vxor.u32 %v76, %v84
    %v93 = vxor.u32 %v77, %v85
    %v94 = vxor.u32 %v78, %v86
    %v95 = vxor.u32 %v79, %v87
    %v96 = vxor.u32 %v80, %v88
    %v97 = vxor.u32 %v81, %v89
    %v98 = vxor.u32 %v82, %v90
    %v99 = vxor.u32 %v83, %v91
    %v100 = vmul.u32 %v92, 2221713035
    %v101 = vmul.u32 %v93, 2221713035
    %v102 = vmul.u32 %v94, 2221713035
    %v103 = vmul.u32 %v95, 2221713035
    %v104 = vmul.u32 %v96, 2221713035
    %v105 = vmul.u32 %v97, 2221713035
    %v106 = vmul.u32 %v98, 2221713035
    %v107 = vmul.u32 %v99, 2221713035
    %v108 = vshrl.u32 %v100, 16
    %v109 = vshrl.u32 %v101, 16
    %v110 = vshrl.u32 %v102, 16
    %v111 = vshrl.u32 %v103, 16
    %v112 = vshrl.u32 %v104, 16
    %v113 = vshrl.u32 %v105, 16
    %v114 = vshrl.u32 %v106, 16
    %v115 = vshrl.u32 %v107, 16
    %v116 = vxor.u32 %v100, %v108
    %v117 = vxor.u32 %v101, %v109
    %v118 = vxor.u32 %v102, %v110
    %v119 = vxor.u32 %v103, %v111
    %v120 = vxor.u32 %v104, %v112
    %v121 = vxor.u32 %v105, %v113
    %v122 = vxor.u32 %v106, %v114
    %v123 = vxor.u32 %v107, %v115
    %v124 = vshrl.u32 %v116, 9
    %v125 = vshrl.u32 %v117, 9
    %v126 = vshrl.u32 %v118, 9
    %v127 = vshrl.u32 %v119, 9
    %v128 = vshrl.u32 %v120, 9
    %v129 = vshrl.u32 %v121, 9
    %v130 = vshrl.u32 %v122, 9
    %v131 = vshrl.u32 %v123, 9
    %v132 = vor.u32 %v124, 1065353216
    %v133 = vor.u32 %v125, 1065353216
    %v134 = vor.u32 %v126, 1065353216
    %v135 = vor.u32 %v127, 1065353216
    %v136 = vor.u32 %v128, 1065353216
    %v137 = vor.u32 %v129, 1065353216
    %v138 = vor.u32 %v130, 1065353216
    %v139 = vor.u32 %v131, 1065353216
    %v148 = vsub.f32 %v132, 1.0
    %v149 = vsub.f32 %v133, 1.0
    %v150 = vsub.f32 %v134, 1.0
    %v151 = vsub.f32 %v135, 1.0
    %v152 = vsub.f32 %v136, 1.0
    %v153 = vsub.f32 %v137, 1.0
    %v154 = vsub.f32 %v138, 1.0
    %v155 = vsub.f32 %v139, 1.0
    %v156 = vsub.f32 1.0, %v148
    %v157 = vsub.f32 1.0, %v149
    %v158 = vsub.f32 1.0, %v150
    %v159 = vsub.f32 1.0, %v151
    %v160 = vlog2.pop %v156
    %v161 = vmul.f32 %v160, 0.6931472
    %v162 = vlog2.pop %v157
    %v163 = vmul.f32 %v162, 0.6931472
    %v164 = vlog2.pop %v158
    %v165 = vmul.f32 %v164, 0.6931472
    %v166 = vlog2.pop %v159
    %v167 = vmul.f32 %v166, 0.6931472
    %v168 = vmul.f32 %v161, -2.0
    %v169 = vmul.f32 %v163, -2.0
    %v170 = vmul.f32 %v165, -2.0
    %v171 = vmul.f32 %v167, -2.0
    %v172 = vrsqrt.pop %v168
    %v173 = vmul.f32 %v168, %v172
    %vm174 = vcmp.eq.f32.partialorder %v168, inf
    %v175 = vsel %vm174, %v168, %v173
    %vm176 = vcmp.eq.f32.partialorder %v168, 0.0
    %v177 = vand.u32 %v168, 2147483648
    %v178 = vsel %vm176, %v177, %v175
    %v179 = vrsqrt.pop %v169
    %v180 = vmul.f32 %v169, %v179
    %vm181 = vcmp.eq.f32.partialorder %v169, inf
    %v182 = vsel %vm181, %v169, %v180
    %vm183 = vcmp.eq.f32.partialorder %v169, 0.0
    %v184 = vand.u32 %v169, 2147483648
    %v185 = vsel %vm183, %v184, %v182
    %v186 = vrsqrt.pop %v170
    %v187 = vmul.f32 %v170, %v186
    %vm188 = vcmp.eq.f32.partialorder %v170, inf
    %v189 = vsel %vm188, %v170, %v187
    %vm190 = vcmp.eq.f32.partialorder %v170, 0.0
    %v191 = vand.u32 %v170, 2147483648
    %v192 = vsel %vm190, %v191, %v189
    %v193 = vrsqrt.pop %v171
    %v194 = vmul.f32 %v171, %v193
    %vm195 = vcmp.eq.f32.partialorder %v171, inf
    %v196 = vsel %vm195, %v171, %v194
    %vm197 = vcmp.eq.f32.partialorder %v171, 0.0
    %v198 = vand.u32 %v171, 2147483648
    %v199 = vsel %vm197, %v198, %v196
    %v200 = vmul.f32 %v152, 6.2831855
    %v201 = vmul.f32 %v153, 6.2831855
    %v202 = vmul.f32 %v154, 6.2831855
    %v203 = vmul.f32 %v155, 6.2831855
    %v204 = vand.u32 2147483647, %v200
    %vm205 = vcmp.le.f32.partialorder %v204, 0.7853982
    %vm206 = vcmp.lt.s32.totalorder %v200, 0
    %v207 = vand.u32 %v200, 2139095040
    %v208 = vshrl.u32 %v207, 23
    %v209 = vsub.s32 %v208, 127
    %v210 = vand.u32 2147483647, %v200
    %v211 = vand.u32 %v210, 8388607
    %v212 = vor.u32 %v211, 8388608
    %v213 = vsub.s32 0, %v212
    %v214 = vadd.s32 %v209, 1
    %vm215 = vcmp.gt.s32.totalorder %v214, 0
    %v216 = vsel %vm215, %v214, 0
    %v217 = vshrl.u32 %v216, 5
    %v218 = vand.u32 %v216, 31
    %v219 = vsub.s32 32, %v218
    %v220 = vshrl.u32 683565275, %v219
    %v221 = vshll.u32 683565275, %v218
    %v222 = vshrl.u32 2475754826, %v219
    %v223 = vor.u32 %v221, %v222
    %v224 = vshll.u32 2475754826, %v218
    %v225 = vshrl.u32 2131351028, %v219
    %v226 = vor.u32 %v224, %v225
    %v227 = vshll.u32 2131351028, %v218
    %v228 = vshrl.u32 2102212464, %v219
    %v229 = vor.u32 %v227, %v228
    %v230 = vshll.u32 2102212464, %v218
    %v231 = vshrl.u32 920167782, %v219
    %v232 = vor.u32 %v230, %v231
    %v233 = vshll.u32 920167782, %v218
    %v234 = vshrl.u32 1326507024, %v219
    %v235 = vor.u32 %v233, %v234
    %vm236 = vcmp.lt.s32.totalorder %v217, 1
    %vm237 = vcmp.lt.s32.totalorder %v217, 2
    %vm238 = vcmp.lt.s32.totalorder %v217, 3
    %vm239 = vcmp.lt.s32.totalorder %v217, 4
    %v240 = vsel %vm236, %v220, %v223
    %v241 = vsel %vm239, %v229, 2102212464
    %v242 = vsel %vm238, %v226, %v241
    %v243 = vsel %vm237, %v240, %v242
    %v244 = vsel %vm236, %v223, %v226
    %v245 = vsel %vm239, %v232, 920167782
    %v246 = vsel %vm238, %v229, %v245
    %v247 = vsel %vm237, %v244, %v246
    %v248 = vsel %vm236, %v226, %v229
    %v249 = vsel %vm239, %v235, 1326507024
    %v250 = vsel %vm238, %v232, %v249
    %v251 = vsel %vm237, %v248, %v250
    %v252 = vshll.u32 %v212, 8
    %v253 = vmul.u32.u64.compose %v252, %v251
    %v254 = vextract.low.u32 %v253
    %v255 = vextract.high.u32 %v253
    %v256 = vmul.u32.u64.compose %v252, %v247
    %v257 = vextract.low.u32 %v256
    %v258 = vextract.high.u32 %v256
    %v259 = vmul.u32 %v252, %v243
    %v260 = vadd.s32 %v255, %v257
    %vm261 = vc.u32 %v255, %v257
    %v262 = vadd.s32 %v258, 1
    %v263 = vsel %vm261, %v262, %v258
    %v264 = vadd.s32 %v259, %v263
    %v265 = vadd.s32 %v264, 536870912
    %v266 = vshrl.u32 %v265, 30
    %v267 = vshll.u32 %v266, 30
    %v268 = vsub.s32 %v264, %v267
    %vm269 = vcmp.lt.s32.totalorder %v268, 0
    %v270 = vsub.s32 0, %v268
    %v271 = vsel %vm269, %v270, %v268
    %v272 = vclz %v271
    %v273 = vsub.s32 %v272, 2
    %vm274 = vcmp.gt.s32.totalorder 0, %v273
    %v275 = vsel %vm274, 0, %v273
    %v276 = vsub.s32 32, %v275
    %v277 = vshll.u32 %v268, %v275
    %v278 = vshrl.u32 %v260, %v276
    %v279 = vor.u32 %v277, %v278
    %v280 = vsub.s32 4294967266, %v275
    %v281 = vadd.s32 %v280, 127
    %v282 = vshll.u32 %v281, 23
    %v283 = vor.u32 4788187, %v282
    %v284 = vand.u32 2147483647, %v283
    %v286 = vcvt.s32.f32 %v279
    %v287 = vmul.f32 %v286, %v284
    %v288 = vxor.u32 %v287, 2147483648
    %v289 = vsel %vm206, %v288, %v287
    %v290 = vsub.s32 4, %v266
    %v291 = vsel %vm206, %v290, %v266
    %v292 = vsel %vm205, %v200, %v289
    %v293 = vsel %vm205, 0, %v291
    %v294 = vcosq.f32.pop %v292
    %v295 = vsinq.f32.pop %v292
    %vm296 = vweird.f32 %v200
    %v297 = vand.u32 %v293, 3
    %vm298 = vcmp.lt.s32.totalorder %v297, 2
    %vm299 = vcmp.eq.s32.totalorder %v297, 0
    %v300 = vxor.u32 %v295, 2147483648
    %v301 = vsel %vm299, %v294, %v300
    %vm302 = vcmp.eq.s32.totalorder %v297, 2
    %v303 = vxor.u32 %v294, 2147483648
    %v304 = vsel %vm302, %v303, %v295
    %v305 = vsel %vm298, %v301, %v304
    %v306 = vsel %vm296, nan, %v305
    %v307 = vand.u32 2147483647, %v201
    %vm308 = vcmp.le.f32.partialorder %v307, 0.7853982
    %vm309 = vcmp.lt.s32.totalorder %v201, 0
    %v310 = vand.u32 %v201, 2139095040
    %v311 = vshrl.u32 %v310, 23
    %v312 = vsub.s32 %v311, 127
    %v313 = vand.u32 2147483647, %v201
    %v314 = vand.u32 %v313, 8388607
    %v315 = vor.u32 %v314, 8388608
    %v316 = vsub.s32 0, %v315
    %v317 = vadd.s32 %v312, 1
    %vm318 = vcmp.gt.s32.totalorder %v317, 0
    %v319 = vsel %vm318, %v317, 0
    %v320 = vshrl.u32 %v319, 5
    %v321 = vand.u32 %v319, 31
    %v322 = vsub.s32 32, %v321
    %v323 = vshrl.u32 683565275, %v322
    %v324 = vshll.u32 683565275, %v321
    %v325 = vshrl.u32 2475754826, %v322
    %v326 = vor.u32 %v324, %v325
    %v327 = vshll.u32 2475754826, %v321
    %v328 = vshrl.u32 2131351028, %v322
    %v329 = vor.u32 %v327, %v328
    %v330 = vshll.u32 2131351028, %v321
    %v331 = vshrl.u32 2102212464, %v322
    %v332 = vor.u32 %v330, %v331
    %v333 = vshll.u32 2102212464, %v321
    %v334 = vshrl.u32 920167782, %v322
    %v335 = vor.u32 %v333, %v334
    %v336 = vshll.u32 920167782, %v321
    %v337 = vshrl.u32 1326507024, %v322
    %v338 = vor.u32 %v336, %v337
    %vm339 = vcmp.lt.s32.totalorder %v320, 1
    %vm340 = vcmp.lt.s32.totalorder %v320, 2
    %vm341 = vcmp.lt.s32.totalorder %v320, 3
    %vm342 = vcmp.lt.s32.totalorder %v320, 4
    %v343 = vsel %vm339, %v323, %v326
    %v344 = vsel %vm342, %v332, 2102212464
    %v345 = vsel %vm341, %v329, %v344
    %v346 = vsel %vm340, %v343, %v345
    %v347 = vsel %vm339, %v326, %v329
    %v348 = vsel %vm342, %v335, 920167782
    %v349 = vsel %vm341, %v332, %v348
    %v350 = vsel %vm340, %v347, %v349
    %v351 = vsel %vm339, %v329, %v332
    %v352 = vsel %vm342, %v338, 1326507024
    %v353 = vsel %vm341, %v335, %v352
    %v354 = vsel %vm340, %v351, %v353
    %v355 = vshll.u32 %v315, 8
    %v356 = vmul.u32.u64.compose %v355, %v354
    %v357 = vextract.low.u32 %v356
    %v358 = vextract.high.u32 %v356
    %v359 = vmul.u32.u64.compose %v355, %v350
    %v360 = vextract.low.u32 %v359
    %v361 = vextract.high.u32 %v359
    %v362 = vmul.u32 %v355, %v346
    %v363 = vadd.s32 %v358, %v360
    %vm364 = vc.u32 %v358, %v360
    %v365 = vadd.s32 %v361, 1
    %v366 = vsel %vm364, %v365, %v361
    %v367 = vadd.s32 %v362, %v366
    %v368 = vadd.s32 %v367, 536870912
    %v369 = vshrl.u32 %v368, 30
    %v370 = vshll.u32 %v369, 30
    %v371 = vsub.s32 %v367, %v370
    %vm372 = vcmp.lt.s32.totalorder %v371, 0
    %v373 = vsub.s32 0, %v371
    %v374 = vsel %vm372, %v373, %v371
    %v375 = vclz %v374
    %v376 = vsub.s32 %v375, 2
    %vm377 = vcmp.gt.s32.totalorder 0, %v376
    %v378 = vsel %vm377, 0, %v376
    %v379 = vsub.s32 32, %v378
    %v380 = vshll.u32 %v371, %v378
    %v381 = vshrl.u32 %v363, %v379
    %v382 = vor.u32 %v380, %v381
    %v383 = vsub.s32 4294967266, %v378
    %v384 = vadd.s32 %v383, 127
    %v385 = vshll.u32 %v384, 23
    %v386 = vor.u32 4788187, %v385
    %v387 = vand.u32 2147483647, %v386
    %v389 = vcvt.s32.f32 %v382
    %v390 = vmul.f32 %v389, %v387
    %v391 = vxor.u32 %v390, 2147483648
    %v392 = vsel %vm309, %v391, %v390
    %v393 = vsub.s32 4, %v369
    %v394 = vsel %vm309, %v393, %v369
    %v395 = vsel %vm308, %v201, %v392
    %v396 = vsel %vm308, 0, %v394
    %v397 = vcosq.f32.pop %v395
    %v398 = vsinq.f32.pop %v395
    %vm399 = vweird.f32 %v201
    %v400 = vand.u32 %v396, 3
    %vm401 = vcmp.lt.s32.totalorder %v400, 2
    %vm402 = vcmp.eq.s32.totalorder %v400, 0
    %v403 = vxor.u32 %v398, 2147483648
    %v404 = vsel %vm402, %v397, %v403
    %vm405 = vcmp.eq.s32.totalorder %v400, 2
    %v406 = vxor.u32 %v397, 2147483648
    %v407 = vsel %vm405, %v406, %v398
    %v408 = vsel %vm401, %v404, %v407
    %v409 = vsel %vm399, nan, %v408
    %v410 = vand.u32 2147483647, %v202
    %vm411 = vcmp.le.f32.partialorder %v410, 0.7853982
    %vm412 = vcmp.lt.s32.totalorder %v202, 0
    %v413 = vand.u32 %v202, 2139095040
    %v414 = vshrl.u32 %v413, 23
    %v415 = vsub.s32 %v414, 127
    %v416 = vand.u32 2147483647, %v202
    %v417 = vand.u32 %v416, 8388607
    %v418 = vor.u32 %v417, 8388608
    %v419 = vsub.s32 0, %v418
    %v420 = vadd.s32 %v415, 1
    %vm421 = vcmp.gt.s32.totalorder %v420, 0
    %v422 = vsel %vm421, %v420, 0
    %v423 = vshrl.u32 %v422, 5
    %v424 = vand.u32 %v422, 31
    %v425 = vsub.s32 32, %v424
    %v426 = vshrl.u32 683565275, %v425
    %v427 = vshll.u32 683565275, %v424
    %v428 = vshrl.u32 2475754826, %v425
    %v429 = vor.u32 %v427, %v428
    %v430 = vshll.u32 2475754826, %v424
    %v431 = vshrl.u32 2131351028, %v425
    %v432 = vor.u32 %v430, %v431
    %v433 = vshll.u32 2131351028, %v424
    %v434 = vshrl.u32 2102212464, %v425
    %v435 = vor.u32 %v433, %v434
    %v436 = vshll.u32 2102212464, %v424
    %v437 = vshrl.u32 920167782, %v425
    %v438 = vor.u32 %v436, %v437
    %v439 = vshll.u32 920167782, %v424
    %v440 = vshrl.u32 1326507024, %v425
    %v441 = vor.u32 %v439, %v440
    %vm442 = vcmp.lt.s32.totalorder %v423, 1
    %vm443 = vcmp.lt.s32.totalorder %v423, 2
    %vm444 = vcmp.lt.s32.totalorder %v423, 3
    %vm445 = vcmp.lt.s32.totalorder %v423, 4
    %v446 = vsel %vm442, %v426, %v429
    %v447 = vsel %vm445, %v435, 2102212464
    %v448 = vsel %vm444, %v432, %v447
    %v449 = vsel %vm443, %v446, %v448
    %v450 = vsel %vm442, %v429, %v432
    %v451 = vsel %vm445, %v438, 920167782
    %v452 = vsel %vm444, %v435, %v451
    %v453 = vsel %vm443, %v450, %v452
    %v454 = vsel %vm442, %v432, %v435
    %v455 = vsel %vm445, %v441, 1326507024
    %v456 = vsel %vm444, %v438, %v455
    %v457 = vsel %vm443, %v454, %v456
    %v458 = vshll.u32 %v418, 8
    %v459 = vmul.u32.u64.compose %v458, %v457
    %v460 = vextract.low.u32 %v459
    %v461 = vextract.high.u32 %v459
    %v462 = vmul.u32.u64.compose %v458, %v453
    %v463 = vextract.low.u32 %v462
    %v464 = vextract.high.u32 %v462
    %v465 = vmul.u32 %v458, %v449
    %v466 = vadd.s32 %v461, %v463
    %vm467 = vc.u32 %v461, %v463
    %v468 = vadd.s32 %v464, 1
    %v469 = vsel %vm467, %v468, %v464
    %v470 = vadd.s32 %v465, %v469
    %v471 = vadd.s32 %v470, 536870912
    %v472 = vshrl.u32 %v471, 30
    %v473 = vshll.u32 %v472, 30
    %v474 = vsub.s32 %v470, %v473
    %vm475 = vcmp.lt.s32.totalorder %v474, 0
    %v476 = vsub.s32 0, %v474
    %v477 = vsel %vm475, %v476, %v474
    %v478 = vclz %v477
    %v479 = vsub.s32 %v478, 2
    %vm480 = vcmp.gt.s32.totalorder 0, %v479
    %v481 = vsel %vm480, 0, %v479
    %v482 = vsub.s32 32, %v481
    %v483 = vshll.u32 %v474, %v481
    %v484 = vshrl.u32 %v466, %v482
    %v485 = vor.u32 %v483, %v484
    %v486 = vsub.s32 4294967266, %v481
    %v487 = vadd.s32 %v486, 127
    %v488 = vshll.u32 %v487, 23
    %v489 = vor.u32 4788187, %v488
    %v490 = vand.u32 2147483647, %v489
    %v492 = vcvt.s32.f32 %v485
    %v493 = vmul.f32 %v492, %v490
    %v494 = vxor.u32 %v493, 2147483648
    %v495 = vsel %vm412, %v494, %v493
    %v496 = vsub.s32 4, %v472
    %v497 = vsel %vm412, %v496, %v472
    %v498 = vsel %vm411, %v202, %v495
    %v499 = vsel %vm411, 0, %v497
    %v500 = vcosq.f32.pop %v498
    %v501 = vsinq.f32.pop %v498
    %vm502 = vweird.f32 %v202
    %v503 = vand.u32 %v499, 3
    %vm504 = vcmp.lt.s32.totalorder %v503, 2
    %vm505 = vcmp.eq.s32.totalorder %v503, 0
    %v506 = vxor.u32 %v501, 2147483648
    %v507 = vsel %vm505, %v500, %v506
    %vm508 = vcmp.eq.s32.totalorder %v503, 2
    %v509 = vxor.u32 %v500, 2147483648
    %v510 = vsel %vm508, %v509, %v501
    %v511 = vsel %vm504, %v507, %v510
    %v512 = vsel %vm502, nan, %v511
    %v513 = vand.u32 2147483647, %v203
    %vm514 = vcmp.le.f32.partialorder %v513, 0.7853982
    %vm515 = vcmp.lt.s32.totalorder %v203, 0
    %v516 = vand.u32 %v203, 2139095040
    %v517 = vshrl.u32 %v516, 23
    %v518 = vsub.s32 %v517, 127
    %v519 = vand.u32 2147483647, %v203
    %v520 = vand.u32 %v519, 8388607
    %v521 = vor.u32 %v520, 8388608
    %v522 = vsub.s32 0, %v521
    %v523 = vadd.s32 %v518, 1
    %vm524 = vcmp.gt.s32.totalorder %v523, 0
    %v525 = vsel %vm524, %v523, 0
    %v526 = vshrl.u32 %v525, 5
    %v527 = vand.u32 %v525, 31
    %v528 = vsub.s32 32, %v527
    %v529 = vshrl.u32 683565275, %v528
    %v530 = vshll.u32 683565275, %v527
    %v531 = vshrl.u32 2475754826, %v528
    %v532 = vor.u32 %v530, %v531
    %v533 = vshll.u32 2475754826, %v527
    %v534 = vshrl.u32 2131351028, %v528
    %v535 = vor.u32 %v533, %v534
    %v536 = vshll.u32 2131351028, %v527
    %v537 = vshrl.u32 2102212464, %v528
    %v538 = vor.u32 %v536, %v537
    %v539 = vshll.u32 2102212464, %v527
    %v540 = vshrl.u32 920167782, %v528
    %v541 = vor.u32 %v539, %v540
    %v542 = vshll.u32 920167782, %v527
    %v543 = vshrl.u32 1326507024, %v528
    %v544 = vor.u32 %v542, %v543
    %vm545 = vcmp.lt.s32.totalorder %v526, 1
    %vm546 = vcmp.lt.s32.totalorder %v526, 2
    %vm547 = vcmp.lt.s32.totalorder %v526, 3
    %vm548 = vcmp.lt.s32.totalorder %v526, 4
    %v549 = vsel %vm545, %v529, %v532
    %v550 = vsel %vm548, %v538, 2102212464
    %v551 = vsel %vm547, %v535, %v550
    %v552 = vsel %vm546, %v549, %v551
    %v553 = vsel %vm545, %v532, %v535
    %v554 = vsel %vm548, %v541, 920167782
    %v555 = vsel %vm547, %v538, %v554
    %v556 = vsel %vm546, %v553, %v555
    %v557 = vsel %vm545, %v535, %v538
    %v558 = vsel %vm548, %v544, 1326507024
    %v559 = vsel %vm547, %v541, %v558
    %v560 = vsel %vm546, %v557, %v559
    %v561 = vshll.u32 %v521, 8
    %v562 = vmul.u32.u64.compose %v561, %v560
    %v563 = vextract.low.u32 %v562
    %v564 = vextract.high.u32 %v562
    %v565 = vmul.u32.u64.compose %v561, %v556
    %v566 = vextract.low.u32 %v565
    %v567 = vextract.high.u32 %v565
    %v568 = vmul.u32 %v561, %v552
    %v569 = vadd.s32 %v564, %v566
    %vm570 = vc.u32 %v564, %v566
    %v571 = vadd.s32 %v567, 1
    %v572 = vsel %vm570, %v571, %v567
    %v573 = vadd.s32 %v568, %v572
    %v574 = vadd.s32 %v573, 536870912
    %v575 = vshrl.u32 %v574, 30
    %v576 = vshll.u32 %v575, 30
    %v577 = vsub.s32 %v573, %v576
    %vm578 = vcmp.lt.s32.totalorder %v577, 0
    %v579 = vsub.s32 0, %v577
    %v580 = vsel %vm578, %v579, %v577
    %v581 = vclz %v580
    %v582 = vsub.s32 %v581, 2
    %vm583 = vcmp.gt.s32.totalorder 0, %v582
    %v584 = vsel %vm583, 0, %v582
    %v585 = vsub.s32 32, %v584
    %v586 = vshll.u32 %v577, %v584
    %v587 = vshrl.u32 %v569, %v585
    %v588 = vor.u32 %v586, %v587
    %v589 = vsub.s32 4294967266, %v584
    %v590 = vadd.s32 %v589, 127
    %v591 = vshll.u32 %v590, 23
    %v592 = vor.u32 4788187, %v591
    %v593 = vand.u32 2147483647, %v592
    %v595 = vcvt.s32.f32 %v588
    %v596 = vmul.f32 %v595, %v593
    %v597 = vxor.u32 %v596, 2147483648
    %v598 = vsel %vm515, %v597, %v596
    %v599 = vsub.s32 4, %v575
    %v600 = vsel %vm515, %v599, %v575
    %v601 = vsel %vm514, %v203, %v598
    %v602 = vsel %vm514, 0, %v600
    %v603 = vcosq.f32.pop %v601
    %v604 = vsinq.f32.pop %v601
    %vm605 = vweird.f32 %v203
    %v606 = vand.u32 %v602, 3
    %vm607 = vcmp.lt.s32.totalorder %v606, 2
    %vm608 = vcmp.eq.s32.totalorder %v606, 0
    %v609 = vxor.u32 %v604, 2147483648
    %v610 = vsel %vm608, %v603, %v609
    %vm611 = vcmp.eq.s32.totalorder %v606, 2
    %v612 = vxor.u32 %v603, 2147483648
    %v613 = vsel %vm611, %v612, %v604
    %v614 = vsel %vm607, %v610, %v613
    %v615 = vsel %vm605, nan, %v614
    %v616 = vmul.f32 %v178, %v306
    %v617 = vmul.f32 %v185, %v409
    %v618 = vmul.f32 %v192, %v512
    %v619 = vmul.f32 %v199, %v615
    %v620 = vand.u32 2147483647, %v200
    %vm621 = vcmp.le.f32.partialorder %v620, 0.7853982
    %vm622 = vcmp.lt.s32.totalorder %v200, 0
    %v623 = vand.u32 %v200, 2139095040
    %v624 = vshrl.u32 %v623, 23
    %v625 = vsub.s32 %v624, 127
    %v626 = vand.u32 2147483647, %v200
    %v627 = vand.u32 %v626, 8388607
    %v628 = vor.u32 %v627, 8388608
    %v629 = vsub.s32 0, %v628
    %v630 = vadd.s32 %v625, 1
    %vm631 = vcmp.gt.s32.totalorder %v630, 0
    %v632 = vsel %vm631, %v630, 0
    %v633 = vshrl.u32 %v632, 5
    %v634 = vand.u32 %v632, 31
    %v635 = vsub.s32 32, %v634
    %v636 = vshrl.u32 683565275, %v635
    %v637 = vshll.u32 683565275, %v634
    %v638 = vshrl.u32 2475754826, %v635
    %v639 = vor.u32 %v637, %v638
    %v640 = vshll.u32 2475754826, %v634
    %v641 = vshrl.u32 2131351028, %v635
    %v642 = vor.u32 %v640, %v641
    %v643 = vshll.u32 2131351028, %v634
    %v644 = vshrl.u32 2102212464, %v635
    %v645 = vor.u32 %v643, %v644
    %v646 = vshll.u32 2102212464, %v634
    %v647 = vshrl.u32 920167782, %v635
    %v648 = vor.u32 %v646, %v647
    %v649 = vshll.u32 920167782, %v634
    %v650 = vshrl.u32 1326507024, %v635
    %v651 = vor.u32 %v649, %v650
    %vm652 = vcmp.lt.s32.totalorder %v633, 1
    %vm653 = vcmp.lt.s32.totalorder %v633, 2
    %vm654 = vcmp.lt.s32.totalorder %v633, 3
    %vm655 = vcmp.lt.s32.totalorder %v633, 4
    %v656 = vsel %vm652, %v636, %v639
    %v657 = vsel %vm655, %v645, 2102212464
    %v658 = vsel %vm654, %v642, %v657
    %v659 = vsel %vm653, %v656, %v658
    %v660 = vsel %vm652, %v639, %v642
    %v661 = vsel %vm655, %v648, 920167782
    %v662 = vsel %vm654, %v645, %v661
    %v663 = vsel %vm653, %v660, %v662
    %v664 = vsel %vm652, %v642, %v645
    %v665 = vsel %vm655, %v651, 1326507024
    %v666 = vsel %vm654, %v648, %v665
    %v667 = vsel %vm653, %v664, %v666
    %v668 = vshll.u32 %v628, 8
    %v669 = vmul.u32.u64.compose %v668, %v667
    %v670 = vextract.low.u32 %v669
    %v671 = vextract.high.u32 %v669
    %v672 = vmul.u32.u64.compose %v668, %v663
    %v673 = vextract.low.u32 %v672
    %v674 = vextract.high.u32 %v672
    %v675 = vmul.u32 %v668, %v659
    %v676 = vadd.s32 %v671, %v673
    %vm677 = vc.u32 %v671, %v673
    %v678 = vadd.s32 %v674, 1
    %v679 = vsel %vm677, %v678, %v674
    %v680 = vadd.s32 %v675, %v679
    %v681 = vadd.s32 %v680, 536870912
    %v682 = vshrl.u32 %v681, 30
    %v683 = vshll.u32 %v682, 30
    %v684 = vsub.s32 %v680, %v683
    %vm685 = vcmp.lt.s32.totalorder %v684, 0
    %v686 = vsub.s32 0, %v684
    %v687 = vsel %vm685, %v686, %v684
    %v688 = vclz %v687
    %v689 = vsub.s32 %v688, 2
    %vm690 = vcmp.gt.s32.totalorder 0, %v689
    %v691 = vsel %vm690, 0, %v689
    %v692 = vsub.s32 32, %v691
    %v693 = vshll.u32 %v684, %v691
    %v694 = vshrl.u32 %v676, %v692
    %v695 = vor.u32 %v693, %v694
    %v696 = vsub.s32 4294967266, %v691
    %v697 = vadd.s32 %v696, 127
    %v698 = vshll.u32 %v697, 23
    %v699 = vor.u32 4788187, %v698
    %v700 = vand.u32 2147483647, %v699
    %v702 = vcvt.s32.f32 %v695
    %v703 = vmul.f32 %v702, %v700
    %v704 = vxor.u32 %v703, 2147483648
    %v705 = vsel %vm622, %v704, %v703
    %v706 = vsub.s32 4, %v682
    %v707 = vsel %vm622, %v706, %v682
    %v708 = vsel %vm621, %v200, %v705
    %v709 = vsel %vm621, 0, %v707
    %v710 = vcosq.f32.pop %v708
    %v711 = vsinq.f32.pop %v708
    %vm712 = vweird.f32 %v200
    %v713 = vadd.s32 %v709, 3
    %v714 = vand.u32 %v713, 3
    %vm715 = vcmp.lt.s32.totalorder %v714, 2
    %vm716 = vcmp.eq.s32.totalorder %v714, 0
    %v717 = vxor.u32 %v711, 2147483648
    %v718 = vsel %vm716, %v710, %v717
    %vm719 = vcmp.eq.s32.totalorder %v714, 2
    %v720 = vxor.u32 %v710, 2147483648
    %v721 = vsel %vm719, %v720, %v711
    %v722 = vsel %vm715, %v718, %v721
    %v723 = vsel %vm712, nan, %v722
    %v724 = vand.u32 2147483647, %v201
    %vm725 = vcmp.le.f32.partialorder %v724, 0.7853982
    %vm726 = vcmp.lt.s32.totalorder %v201, 0
    %v727 = vand.u32 %v201, 2139095040
    %v728 = vshrl.u32 %v727, 23
    %v729 = vsub.s32 %v728, 127
    %v730 = vand.u32 2147483647, %v201
    %v731 = vand.u32 %v730, 8388607
    %v732 = vor.u32 %v731, 8388608
    %v733 = vsub.s32 0, %v732
    %v734 = vadd.s32 %v729, 1
    %vm735 = vcmp.gt.s32.totalorder %v734, 0
    %v736 = vsel %vm735, %v734, 0
    %v737 = vshrl.u32 %v736, 5
    %v738 = vand.u32 %v736, 31
    %v739 = vsub.s32 32, %v738
    %v740 = vshrl.u32 683565275, %v739
    %v741 = vshll.u32 683565275, %v738
    %v742 = vshrl.u32 2475754826, %v739
    %v743 = vor.u32 %v741, %v742
    %v744 = vshll.u32 2475754826, %v738
    %v745 = vshrl.u32 2131351028, %v739
    %v746 = vor.u32 %v744, %v745
    %v747 = vshll.u32 2131351028, %v738
    %v748 = vshrl.u32 2102212464, %v739
    %v749 = vor.u32 %v747, %v748
    %v750 = vshll.u32 2102212464, %v738
    %v751 = vshrl.u32 920167782, %v739
    %v752 = vor.u32 %v750, %v751
    %v753 = vshll.u32 920167782, %v738
    %v754 = vshrl.u32 1326507024, %v739
    %v755 = vor.u32 %v753, %v754
    %vm756 = vcmp.lt.s32.totalorder %v737, 1
    %vm757 = vcmp.lt.s32.totalorder %v737, 2
    %vm758 = vcmp.lt.s32.totalorder %v737, 3
    %vm759 = vcmp.lt.s32.totalorder %v737, 4
    %v760 = vsel %vm756, %v740, %v743
    %v761 = vsel %vm759, %v749, 2102212464
    %v762 = vsel %vm758, %v746, %v761
    %v763 = vsel %vm757, %v760, %v762
    %v764 = vsel %vm756, %v743, %v746
    %v765 = vsel %vm759, %v752, 920167782
    %v766 = vsel %vm758, %v749, %v765
    %v767 = vsel %vm757, %v764, %v766
    %v768 = vsel %vm756, %v746, %v749
    %v769 = vsel %vm759, %v755, 1326507024
    %v770 = vsel %vm758, %v752, %v769
    %v771 = vsel %vm757, %v768, %v770
    %v772 = vshll.u32 %v732, 8
    %v773 = vmul.u32.u64.compose %v772, %v771
    %v774 = vextract.low.u32 %v773
    %v775 = vextract.high.u32 %v773
    %v776 = vmul.u32.u64.compose %v772, %v767
    %v777 = vextract.low.u32 %v776
    %v778 = vextract.high.u32 %v776
    %v779 = vmul.u32 %v772, %v763
    %v780 = vadd.s32 %v775, %v777
    %vm781 = vc.u32 %v775, %v777
    %v782 = vadd.s32 %v778, 1
    %v783 = vsel %vm781, %v782, %v778
    %v784 = vadd.s32 %v779, %v783
    %v785 = vadd.s32 %v784, 536870912
    %v786 = vshrl.u32 %v785, 30
    %v787 = vshll.u32 %v786, 30
    %v788 = vsub.s32 %v784, %v787
    %vm789 = vcmp.lt.s32.totalorder %v788, 0
    %v790 = vsub.s32 0, %v788
    %v791 = vsel %vm789, %v790, %v788
    %v792 = vclz %v791
    %v793 = vsub.s32 %v792, 2
    %vm794 = vcmp.gt.s32.totalorder 0, %v793
    %v795 = vsel %vm794, 0, %v793
    %v796 = vsub.s32 32, %v795
    %v797 = vshll.u32 %v788, %v795
    %v798 = vshrl.u32 %v780, %v796
    %v799 = vor.u32 %v797, %v798
    %v800 = vsub.s32 4294967266, %v795
    %v801 = vadd.s32 %v800, 127
    %v802 = vshll.u32 %v801, 23
    %v803 = vor.u32 4788187, %v802
    %v804 = vand.u32 2147483647, %v803
    %v806 = vcvt.s32.f32 %v799
    %v807 = vmul.f32 %v806, %v804
    %v808 = vxor.u32 %v807, 2147483648
    %v809 = vsel %vm726, %v808, %v807
    %v810 = vsub.s32 4, %v786
    %v811 = vsel %vm726, %v810, %v786
    %v812 = vsel %vm725, %v201, %v809
    %v813 = vsel %vm725, 0, %v811
    %v814 = vcosq.f32.pop %v812
    %v815 = vsinq.f32.pop %v812
    %vm816 = vweird.f32 %v201
    %v817 = vadd.s32 %v813, 3
    %v818 = vand.u32 %v817, 3
    %vm819 = vcmp.lt.s32.totalorder %v818, 2
    %vm820 = vcmp.eq.s32.totalorder %v818, 0
    %v821 = vxor.u32 %v815, 2147483648
    %v822 = vsel %vm820, %v814, %v821
    %vm823 = vcmp.eq.s32.totalorder %v818, 2
    %v824 = vxor.u32 %v814, 2147483648
    %v825 = vsel %vm823, %v824, %v815
    %v826 = vsel %vm819, %v822, %v825
    %v827 = vsel %vm816, nan, %v826
    %v828 = vand.u32 2147483647, %v202
    %vm829 = vcmp.le.f32.partialorder %v828, 0.7853982
    %vm830 = vcmp.lt.s32.totalorder %v202, 0
    %v831 = vand.u32 %v202, 2139095040
    %v832 = vshrl.u32 %v831, 23
    %v833 = vsub.s32 %v832, 127
    %v834 = vand.u32 2147483647, %v202
    %v835 = vand.u32 %v834, 8388607
    %v836 = vor.u32 %v835, 8388608
    %v837 = vsub.s32 0, %v836
    %v838 = vadd.s32 %v833, 1
    %vm839 = vcmp.gt.s32.totalorder %v838, 0
    %v840 = vsel %vm839, %v838, 0
    %v841 = vshrl.u32 %v840, 5
    %v842 = vand.u32 %v840, 31
    %v843 = vsub.s32 32, %v842
    %v844 = vshrl.u32 683565275, %v843
    %v845 = vshll.u32 683565275, %v842
    %v846 = vshrl.u32 2475754826, %v843
    %v847 = vor.u32 %v845, %v846
    %v848 = vshll.u32 2475754826, %v842
    %v849 = vshrl.u32 2131351028, %v843
    %v850 = vor.u32 %v848, %v849
    %v851 = vshll.u32 2131351028, %v842
    %v852 = vshrl.u32 2102212464, %v843
    %v853 = vor.u32 %v851, %v852
    %v854 = vshll.u32 2102212464, %v842
    %v855 = vshrl.u32 920167782, %v843
    %v856 = vor.u32 %v854, %v855
    %v857 = vshll.u32 920167782, %v842
    %v858 = vshrl.u32 1326507024, %v843
    %v859 = vor.u32 %v857, %v858
    %vm860 = vcmp.lt.s32.totalorder %v841, 1
    %vm861 = vcmp.lt.s32.totalorder %v841, 2
    %vm862 = vcmp.lt.s32.totalorder %v841, 3
    %vm863 = vcmp.lt.s32.totalorder %v841, 4
    %v864 = vsel %vm860, %v844, %v847
    %v865 = vsel %vm863, %v853, 2102212464
    %v866 = vsel %vm862, %v850, %v865
    %v867 = vsel %vm861, %v864, %v866
    %v868 = vsel %vm860, %v847, %v850
    %v869 = vsel %vm863, %v856, 920167782
    %v870 = vsel %vm862, %v853, %v869
    %v871 = vsel %vm861, %v868, %v870
    %v872 = vsel %vm860, %v850, %v853
    %v873 = vsel %vm863, %v859, 1326507024
    %v874 = vsel %vm862, %v856, %v873
    %v875 = vsel %vm861, %v872, %v874
    %v876 = vshll.u32 %v836, 8
    %v877 = vmul.u32.u64.compose %v876, %v875
    %v878 = vextract.low.u32 %v877
    %v879 = vextract.high.u32 %v877
    %v880 = vmul.u32.u64.compose %v876, %v871
    %v881 = vextract.low.u32 %v880
    %v882 = vextract.high.u32 %v880
    %v883 = vmul.u32 %v876, %v867
    %v884 = vadd.s32 %v879, %v881
    %vm885 = vc.u32 %v879, %v881
    %v886 = vadd.s32 %v882, 1
    %v887 = vsel %vm885, %v886, %v882
    %v888 = vadd.s32 %v883, %v887
    %v889 = vadd.s32 %v888, 536870912
    %v890 = vshrl.u32 %v889, 30
    %v891 = vshll.u32 %v890, 30
    %v892 = vsub.s32 %v888, %v891
    %vm893 = vcmp.lt.s32.totalorder %v892, 0
    %v894 = vsub.s32 0, %v892
    %v895 = vsel %vm893, %v894, %v892
    %v896 = vclz %v895
    %v897 = vsub.s32 %v896, 2
    %vm898 = vcmp.gt.s32.totalorder 0, %v897
    %v899 = vsel %vm898, 0, %v897
    %v900 = vsub.s32 32, %v899
    %v901 = vshll.u32 %v892, %v899
    %v902 = vshrl.u32 %v884, %v900
    %v903 = vor.u32 %v901, %v902
    %v904 = vsub.s32 4294967266, %v899
    %v905 = vadd.s32 %v904, 127
    %v906 = vshll.u32 %v905, 23
    %v907 = vor.u32 4788187, %v906
    %v908 = vand.u32 2147483647, %v907
    %v910 = vcvt.s32.f32 %v903
    %v911 = vmul.f32 %v910, %v908
    %v912 = vxor.u32 %v911, 2147483648
    %v913 = vsel %vm830, %v912, %v911
    %v914 = vsub.s32 4, %v890
    %v915 = vsel %vm830, %v914, %v890
    %v916 = vsel %vm829, %v202, %v913
    %v917 = vsel %vm829, 0, %v915
    %v918 = vcosq.f32.pop %v916
    %v919 = vsinq.f32.pop %v916
    %vm920 = vweird.f32 %v202
    %v921 = vadd.s32 %v917, 3
    %v922 = vand.u32 %v921, 3
    %vm923 = vcmp.lt.s32.totalorder %v922, 2
    %vm924 = vcmp.eq.s32.totalorder %v922, 0
    %v925 = vxor.u32 %v919, 2147483648
    %v926 = vsel %vm924, %v918, %v925
    %vm927 = vcmp.eq.s32.totalorder %v922, 2
    %v928 = vxor.u32 %v918, 2147483648
    %v929 = vsel %vm927, %v928, %v919
    %v930 = vsel %vm923, %v926, %v929
    %v931 = vsel %vm920, nan, %v930
    %v932 = vand.u32 2147483647, %v203
    %vm933 = vcmp.le.f32.partialorder %v932, 0.7853982
    %vm934 = vcmp.lt.s32.totalorder %v203, 0
    %v935 = vand.u32 %v203, 2139095040
    %v936 = vshrl.u32 %v935, 23
    %v937 = vsub.s32 %v936, 127
    %v938 = vand.u32 2147483647, %v203
    %v939 = vand.u32 %v938, 8388607
    %v940 = vor.u32 %v939, 8388608
    %v941 = vsub.s32 0, %v940
    %v942 = vadd.s32 %v937, 1
    %vm943 = vcmp.gt.s32.totalorder %v942, 0
    %v944 = vsel %vm943, %v942, 0
    %v945 = vshrl.u32 %v944, 5
    %v946 = vand.u32 %v944, 31
    %v947 = vsub.s32 32, %v946
    %v948 = vshrl.u32 683565275, %v947
    %v949 = vshll.u32 683565275, %v946
    %v950 = vshrl.u32 2475754826, %v947
    %v951 = vor.u32 %v949, %v950
    %v952 = vshll.u32 2475754826, %v946
    %v953 = vshrl.u32 2131351028, %v947
    %v954 = vor.u32 %v952, %v953
    %v955 = vshll.u32 2131351028, %v946
    %v956 = vshrl.u32 2102212464, %v947
    %v957 = vor.u32 %v955, %v956
    %v958 = vshll.u32 2102212464, %v946
    %v959 = vshrl.u32 920167782, %v947
    %v960 = vor.u32 %v958, %v959
    %v961 = vshll.u32 920167782, %v946
    %v962 = vshrl.u32 1326507024, %v947
    %v963 = vor.u32 %v961, %v962
    %vm964 = vcmp.lt.s32.totalorder %v945, 1
    %vm965 = vcmp.lt.s32.totalorder %v945, 2
    %vm966 = vcmp.lt.s32.totalorder %v945, 3
    %vm967 = vcmp.lt.s32.totalorder %v945, 4
    %v968 = vsel %vm964, %v948, %v951
    %v969 = vsel %vm967, %v957, 2102212464
    %v970 = vsel %vm966, %v954, %v969
    %v971 = vsel %vm965, %v968, %v970
    %v972 = vsel %vm964, %v951, %v954
    %v973 = vsel %vm967, %v960, 920167782
    %v974 = vsel %vm966, %v957, %v973
    %v975 = vsel %vm965, %v972, %v974
    %v976 = vsel %vm964, %v954, %v957
    %v977 = vsel %vm967, %v963, 1326507024
    %v978 = vsel %vm966, %v960, %v977
    %v979 = vsel %vm965, %v976, %v978
    %v980 = vshll.u32 %v940, 8
    %v981 = vmul.u32.u64.compose %v980, %v979
    %v982 = vextract.low.u32 %v981
    %v983 = vextract.high.u32 %v981
    %v984 = vmul.u32.u64.compose %v980, %v975
    %v985 = vextract.low.u32 %v984
    %v986 = vextract.high.u32 %v984
    %v987 = vmul.u32 %v980, %v971
    %v988 = vadd.s32 %v983, %v985
    %vm989 = vc.u32 %v983, %v985
    %v990 = vadd.s32 %v986, 1
    %v991 = vsel %vm989, %v990, %v986
    %v992 = vadd.s32 %v987, %v991
    %v993 = vadd.s32 %v992, 536870912
    %v994 = vshrl.u32 %v993, 30
    %v995 = vshll.u32 %v994, 30
    %v996 = vsub.s32 %v992, %v995
    %vm997 = vcmp.lt.s32.totalorder %v996, 0
    %v998 = vsub.s32 0, %v996
    %v999 = vsel %vm997, %v998, %v996
    %v1000 = vclz %v999
    %v1001 = vsub.s32 %v1000, 2
    %vm1002 = vcmp.gt.s32.totalorder 0, %v1001
    %v1003 = vsel %vm1002, 0, %v1001
    %v1004 = vsub.s32 32, %v1003
    %v1005 = vshll.u32 %v996, %v1003
    %v1006 = vshrl.u32 %v988, %v1004
    %v1007 = vor.u32 %v1005, %v1006
    %v1008 = vsub.s32 4294967266, %v1003
    %v1009 = vadd.s32 %v1008, 127
    %v1010 = vshll.u32 %v1009, 23
    %v1011 = vor.u32 4788187, %v1010
    %v1012 = vand.u32 2147483647, %v1011
    %v1014 = vcvt.s32.f32 %v1007
    %v1015 = vmul.f32 %v1014, %v1012
    %v1016 = vxor.u32 %v1015, 2147483648
    %v1017 = vsel %vm934, %v1016, %v1015
    %v1018 = vsub.s32 4, %v994
    %v1019 = vsel %vm934, %v1018, %v994
    %v1020 = vsel %vm933, %v203, %v1017
    %v1021 = vsel %vm933, 0, %v1019
    %v1022 = vcosq.f32.pop %v1020
    %v1023 = vsinq.f32.pop %v1020
    %vm1024 = vweird.f32 %v203
    %v1025 = vadd.s32 %v1021, 3
    %v1026 = vand.u32 %v1025, 3
    %vm1027 = vcmp.lt.s32.totalorder %v1026, 2
    %vm1028 = vcmp.eq.s32.totalorder %v1026, 0
    %v1029 = vxor.u32 %v1023, 2147483648
    %v1030 = vsel %vm1028, %v1022, %v1029
    %vm1031 = vcmp.eq.s32.totalorder %v1026, 2
    %v1032 = vxor.u32 %v1022, 2147483648
    %v1033 = vsel %vm1031, %v1032, %v1023
    %v1034 = vsel %vm1027, %v1030, %v1033
    %v1035 = vsel %vm1024, nan, %v1034
    %v1036 = vmul.f32 %v178, %v723
    %v1037 = vmul.f32 %v185, %v827
    %v1038 = vmul.f32 %v192, %v931
    %v1039 = vmul.f32 %v199, %v1035
    %v1040 = vmul.f32 %v616, 0.1
    %v1041 = vmul.f32 %v617, 0.1
    %v1042 = vmul.f32 %v618, 0.1
    %v1043 = vmul.f32 %v619, 0.1
    %v1044 = vmul.f32 %v1036, 0.1
    %v1045 = vmul.f32 %v1037, 0.1
    %v1046 = vmul.f32 %v1038, 0.1
    %v1047 = vmul.f32 %v1039, 0.1
    %v1048 = vadd.f32 %v1040, 0.0
    %v1049 = vadd.f32 %v1041, 0.0
    %v1050 = vadd.f32 %v1042, 0.0
    %v1051 = vadd.f32 %v1043, 0.0
    %v1052 = vadd.f32 %v1044, 0.0
    %v1053 = vadd.f32 %v1045, 0.0
    %v1054 = vadd.f32 %v1046, 0.0
    %v1055 = vadd.f32 %v1047, 0.0
    %v1056 = vld [vmem:[#allocation3] sm:$0xff]
    %v1057 = vld [vmem:[#allocation3 + $0x8] sm:$0xff]
    %v1058 = vld [vmem:[#allocation3 + $0x10] sm:$0xff]
    %v1059 = vld [vmem:[#allocation3 + $0x18] sm:$0xff]
    %v1060 = vld [vmem:[#allocation3 + $0x20] sm:$0xff]
    %v1061 = vld [vmem:[#allocation3 + $0x28] sm:$0xff]
    %v1062 = vld [vmem:[#allocation3 + $0x30] sm:$0xff]
    %v1063 = vld [vmem:[#allocation3 + $0x38] sm:$0xff]
    %v1064 = vadd.f32 %v1056, %v1048
    %v1065 = vadd.f32 %v1057, %v1049
    %v1066 = vadd.f32 %v1058, %v1050
    %v1067 = vadd.f32 %v1059, %v1051
    %v1068 = vadd.f32 %v1060, %v1052
    %v1069 = vadd.f32 %v1061, %v1053
    %v1070 = vadd.f32 %v1062, %v1054
    %v1071 = vadd.f32 %v1063, %v1055
    %1072 = vst [vmem:[#allocation6] sm:$0xff] %v1064
    %1073 = vst [vmem:[#allocation6 + $0x8] sm:$0xff] %v1065
    %1074 = vst [vmem:[#allocation6 + $0x10] sm:$0xff] %v1066
    %1075 = vst [vmem:[#allocation6 + $0x18] sm:$0xff] %v1067
    %1076 = vst [vmem:[#allocation6 + $0x20] sm:$0xff] %v1068
    %1077 = vst [vmem:[#allocation6 + $0x28] sm:$0xff] %v1069
    %1078 = vst [vmem:[#allocation6 + $0x30] sm:$0xff] %v1070
    %1079 = vst [vmem:[#allocation6 + $0x38] sm:$0xff] %v1071
    // Predicated region
    $region14: #{tpu_custom_call.1} parent=1 // pred_check
      _
    $region15: #{tpu_custom_call.1} parent=1 // pred_check_branch
      %1081 = sbr.rel (0) target = $region17
    $region16: #{tpu_custom_call.1} parent=1 // pred_region
      %s1083 = ssub.s32 1024, 1024
      %1084 = vsyncadd [#allocation5], %s1083
      %s1085 = sshll.u32 [#allocation6], 4
      %s1086 = int_to_ptr.vmem [resolvable:$true] %s1085
      %1091 = dma.vmem_to_hbm [thread:$0]  %s1086, 1024, %s2, [#allocation5], 512, 512, 32
    $region17: #{tpu_custom_call.1} parent=1 // pred_fallthru
      _
    // Predicated region
    $region18: #{tpu_custom_call.1} parent=1 // pred_check
      _
    $region19: #{tpu_custom_call.1} parent=1 // pred_check_branch
      %1093 = sbr.rel (0) target = $region21
    $region20: #{tpu_custom_call.1} parent=1 // pred_region
      %1094 = dma.done [#allocation5], 1024
    $region21: #{tpu_custom_call.1} parent=1 // pred_fallthru
      _
    %1095 = vsyncpa [#allocation4], 1
    %1096 = vsyncpa [#allocation5], 1

</llo_original>
